<compile_context>
chip_gen: v7x
topology: tpu7x:2x2x1
jax: 0.10.0
libtpu: 0.0.40
codegen_flags: <defaults>
</compile_context>

<pallas_src>
import functools
import numpy as np
import jax
import jax.numpy as jnp
from jax.experimental import pallas as pl
from jax.experimental.pallas import tpu as pltpu

N = 8          # number of samples (rows of `representations`)
D = 32         # representation dim
T = 0.05       # temperature (PyTorch default)

_VMEM = pl.BlockSpec(memory_space=pltpu.MemorySpace.VMEM)


def _con_loss_kernel(reps_ref, lab_col_ref, lab_row_ref, out_ref, *, temp):
    n = reps_ref.shape[0]
    x = reps_ref[...]                                         # (n, d) f32

    # --- cosine-similarity matrix: one MXU push on row-normalized x ---------
    sumsq = jnp.sum(x * x, axis=-1, keepdims=True)            # (n, 1)
    inv_norm = jax.lax.rsqrt(jnp.maximum(sumsq, 1e-16))       # EUP; == eps 1e-8 on the norm
    xn = x * inv_norm
    cos = jax.lax.dot_general(xn, xn, (((1,), (1,)), ((), ())),
                              preferred_element_type=jnp.float32)  # (n, n)

    # --- masks (compile-time iota, no HBM traffic for eye/ones) -------------
    rows = jax.lax.broadcasted_iota(jnp.int32, (n, n), 0)
    cols = jax.lax.broadcasted_iota(jnp.int32, (n, n), 1)
    eye = (rows == cols).astype(jnp.float32)
    off_diag = 1.0 - eye
    lab_i = jnp.broadcast_to(lab_col_ref[...], (n, n))
    lab_j = jnp.broadcast_to(lab_row_ref[...], (n, n))
    same = (lab_i == lab_j).astype(jnp.float32)               # (n, n)

    # --- contrastive loss ----------------------------------------------------
    e = jnp.exp(cos * (1.0 / temp)) * off_diag                # exp on EUP
    pos = same * e                                            # same label, off-diag
    neg = e - pos
    neg_rowsum = jnp.sum(neg, axis=1, keepdims=True)          # (n, 1)
    ratio = pos / (pos + neg_rowsum)                          # sim / sim_sum
    l = (1.0 - same) + ratio + eye
    loss_mat = -jnp.log(l)

    row = jnp.sum(loss_mat, axis=1, keepdims=True)            # lane reduce
    total = jnp.sum(row, axis=0, keepdims=True)               # sublane reduce -> (1, 1)
    out_ref[...] = total * (1.0 / (2.0 * n))


def con_loss_pallas(representations, label, temp=T):
    n, _ = representations.shape
    lab_col = label.reshape(n, 1).astype(jnp.int32)
    lab_row = label.reshape(1, n).astype(jnp.int32)
    # TODO(synk): if many (reps, label) problems are evaluated together, add a
    # batch grid axis with dimension_semantics=("parallel",) so v7x's second
    # TensorCore is used; a single (8, 32) problem has nothing to shard.
    out = pl.pallas_call(
        functools.partial(_con_loss_kernel, temp=temp),
        out_shape=jax.ShapeDtypeStruct((1, 1), jnp.float32),
        in_specs=[_VMEM, _VMEM, _VMEM],
        out_specs=_VMEM,
    )(representations.astype(jnp.float32), lab_col, lab_row)
    return out[0, 0]


# ----------------------- pure-JAX reference (mirrors the PyTorch code) -------
def con_loss_reference(representations, label, temp=T):
    n = label.shape[0]
    dots = jnp.dot(representations, representations.T,
                   precision=jax.lax.Precision.HIGHEST)
    norms = jnp.sqrt(jnp.sum(representations ** 2, axis=1))
    denom = jnp.maximum(norms[:, None] * norms[None, :], 1e-8)
    sim_matrix = dots / denom                                  # F.cosine_similarity

    mask = (label[:, None] == label[None, :]).astype(jnp.float32)
    mask_no_sim = 1.0 - mask
    eye = jnp.eye(n, dtype=jnp.float32)
    mask_dui_jiao_0 = 1.0 - eye

    sim_matrix = jnp.exp(sim_matrix / temp) * mask_dui_jiao_0
    sim = mask * sim_matrix
    no_sim = sim_matrix - sim
    no_sim_sum = jnp.sum(no_sim, axis=1)
    no_sim_sum_expend = jnp.tile(no_sim_sum, (n, 1)).T
    sim_sum = sim + no_sim_sum_expend
    loss = sim / sim_sum
    loss = mask_no_sim + loss + eye
    loss = -jnp.log(loss)
    return jnp.sum(loss) / (2 * n)


if __name__ == "__main__":
    key = jax.random.PRNGKey(0)
    reps = jax.random.normal(key, (N, D), jnp.float32)
    # two classes, each with several members -> positive and negative pairs exist
    label = jnp.array([0, 0, 1, 1, 0, 1, 0, 1], dtype=jnp.int32)

    out = con_loss_pallas(reps, label)
    out = jax.block_until_ready(out)

    ref = con_loss_reference(reps, label)
    if not np.allclose(np.asarray(out), np.asarray(ref), atol=1e-4, rtol=1e-4):
        raise AssertionError(f"Pallas con_loss {out} != reference {ref}")

    print("KERNEL_OK")
</pallas_src>

<mosaic_0001>
module attributes {stable_mosaic.version = 11 : i64} {
  func.func @_con_loss_kernel(%arg0: memref<8x32xf32, #tpu.memory_space<vmem>>, %arg1: memref<8x1xi32, #tpu.memory_space<vmem>>, %arg2: memref<1x8xi32, #tpu.memory_space<vmem>>, %arg3: memref<1x1xf32, #tpu.memory_space<vmem>>) attributes {dimension_semantics = [], scalar_prefetch = 0 : i64, scratch_operands = 0 : i64, tpu.core_type = #tpu.core_type<tc>} {
    %c0 = arith.constant 0 : index
    %c0_0 = arith.constant 0 : index
    %0 = vector.load %arg0[%c0, %c0_0] : memref<8x32xf32, #tpu.memory_space<vmem>>, vector<8x32xf32>
    %1 = arith.mulf %0, %0 : vector<8x32xf32>
    %cst = arith.constant dense<0.000000e+00> : vector<8xf32>
    %2 = vector.multi_reduction <add>, %1, %cst [1] : vector<8x32xf32> to vector<8xf32>
    %3 = vector.shape_cast %2 : vector<8xf32> to vector<8x1xf32>
    %cst_1 = arith.constant 1.000000e-16 : f32
    %4 = vector.broadcast %cst_1 : f32 to vector<8x1xf32>
    %5 = arith.maximumf %3, %4 : vector<8x1xf32>
    %6 = math.rsqrt %5 : vector<8x1xf32>
    %7 = vector.broadcast %6 : vector<8x1xf32> to vector<8x32xf32>
    %8 = arith.mulf %0, %7 : vector<8x32xf32>
    %cst_2 = arith.constant dense<0.000000e+00> : vector<8x8xf32>
    %9 = tpu.matmul %8, %8, %cst_2 {dimension_numbers = #tpu.dot_dimension_numbers<[1], [1], [0], [0], [0, 0, 1, 0], [], []>} : vector<8x32xf32>, vector<8x32xf32>, vector<8x8xf32> -> vector<8x8xf32>
    %10 = tpu.iota {dimensions = array<i32: 0>} : vector<8x8xi32>
    %11 = tpu.iota {dimensions = array<i32: 1>} : vector<8x8xi32>
    %12 = arith.cmpi eq, %10, %11 : vector<8x8xi32>
    %13 = arith.extui %12 : vector<8x8xi1> to vector<8x8xi32>
    %14 = arith.sitofp %13 : vector<8x8xi32> to vector<8x8xf32>
    %cst_3 = arith.constant 1.000000e+00 : f32
    %15 = vector.broadcast %cst_3 : f32 to vector<8x8xf32>
    %16 = arith.subf %15, %14 : vector<8x8xf32>
    %c0_4 = arith.constant 0 : index
    %c0_5 = arith.constant 0 : index
    %17 = vector.load %arg1[%c0_4, %c0_5] : memref<8x1xi32, #tpu.memory_space<vmem>>, vector<8x1xi32>
    %18 = vector.shape_cast %17 : vector<8x1xi32> to vector<8x1xi32>
    %19 = vector.broadcast %18 : vector<8x1xi32> to vector<8x8xi32>
    %c0_6 = arith.constant 0 : index
    %c0_7 = arith.constant 0 : index
    %20 = vector.load %arg2[%c0_6, %c0_7] : memref<1x8xi32, #tpu.memory_space<vmem>>, vector<1x8xi32>
    %21 = vector.shape_cast %20 : vector<1x8xi32> to vector<1x8xi32>
    %22 = vector.broadcast %21 : vector<1x8xi32> to vector<8x8xi32>
    %23 = arith.cmpi eq, %19, %22 : vector<8x8xi32>
    %24 = arith.extui %23 : vector<8x8xi1> to vector<8x8xi32>
    %25 = arith.sitofp %24 : vector<8x8xi32> to vector<8x8xf32>
    %cst_8 = arith.constant 2.000000e+01 : f32
    %26 = vector.broadcast %cst_8 : f32 to vector<8x8xf32>
    %27 = arith.mulf %9, %26 : vector<8x8xf32>
    %28 = math.exp %27 : vector<8x8xf32>
    %29 = arith.mulf %28, %16 : vector<8x8xf32>
    %30 = arith.mulf %25, %29 : vector<8x8xf32>
    %31 = arith.subf %29, %30 : vector<8x8xf32>
    %cst_9 = arith.constant dense<0.000000e+00> : vector<8xf32>
    %32 = vector.multi_reduction <add>, %31, %cst_9 [1] : vector<8x8xf32> to vector<8xf32>
    %33 = vector.shape_cast %32 : vector<8xf32> to vector<8x1xf32>
    %34 = vector.broadcast %33 : vector<8x1xf32> to vector<8x8xf32>
    %35 = arith.addf %30, %34 : vector<8x8xf32>
    %36 = arith.divf %30, %35 : vector<8x8xf32>
    %cst_10 = arith.constant 1.000000e+00 : f32
    %37 = vector.broadcast %cst_10 : f32 to vector<8x8xf32>
    %38 = arith.subf %37, %25 : vector<8x8xf32>
    %39 = arith.addf %38, %36 : vector<8x8xf32>
    %40 = arith.addf %39, %14 : vector<8x8xf32>
    %41 = math.log %40 : vector<8x8xf32>
    %cst_11 = arith.constant 0.000000e+00 : f32
    %42 = vector.broadcast %cst_11 : f32 to vector<8x8xf32>
    %43 = arith.subf %42, %41 : vector<8x8xf32>
    %cst_12 = arith.constant dense<0.000000e+00> : vector<8xf32>
    %44 = vector.multi_reduction <add>, %43, %cst_12 [1] : vector<8x8xf32> to vector<8xf32>
    %45 = vector.shape_cast %44 : vector<8xf32> to vector<8x1xf32>
    %cst_13 = arith.constant dense<0.000000e+00> : vector<1xf32>
    %46 = vector.multi_reduction <add>, %45, %cst_13 [0] : vector<8x1xf32> to vector<1xf32>
    %47 = vector.shape_cast %46 : vector<1xf32> to vector<1x1xf32>
    %cst_14 = arith.constant 6.250000e-02 : f32
    %48 = vector.broadcast %cst_14 : f32 to vector<1x1xf32>
    %49 = arith.mulf %47, %48 : vector<1x1xf32>
    %c0_15 = arith.constant 0 : index
    %c0_16 = arith.constant 0 : index
    %50 = vector.load %arg3[%c0_15, %c0_16] : memref<1x1xf32, #tpu.memory_space<vmem>>, vector<1x1xf32>
    tpu.vector_store %arg3[%c0_15, %c0_16], %49 {strides = array<i32>} : memref<1x1xf32, #tpu.memory_space<vmem>>, vector<1x1xf32>,
    return
  }
}

</mosaic_0001>

<llo_original>
// kernel: tpu_custom_call.1
$region0: #{tpu_custom_call.1}
  #allocation0 [shape = 'u32[]', space=smem, size = 0x4, offset = 0x4, fixed_abs, tag = 'smem constant byte address 0x4 - core index']
  #allocation1 [shape = 'u32[144,128]{1,0:T(1,128)}', space=vmem, size = 0x12000, scoped, tag = 'internal scratch']
  %s0 = inlined_call_operand.vmem [shape: f32[8,32], index: 0, kind: input, shape index: {}]
  %s1 = inlined_call_operand.vmem [shape: s32[8,1], index: 1, kind: input, shape index: {}]
  %s2 = inlined_call_operand.vmem [shape: s32[1,8], index: 2, kind: input, shape index: {}]
  %s3 = inlined_call_operand.hbm [shape: f32[1,1], index: 3, kind: output, shape index: {}]
  %s4 = sld [smem:[#allocation0]]
  $region22: #{tpu_custom_call.1} parent=0
    _
  %s6 = ssub.s32 1, %s4
  %s7 = scalar_select 0, %s6, %s4
  $region1: #{tpu_custom_call.1} parent=0
    #allocation2 [shape = 'u8[512]{0}', space=vmem, size = 0x400, scoped, tag = 'output window, operand 0, single buffered']
    #allocation3 [shape = 's32[1]{0}', space=sflag, size = 0x4, scoped, tag = 'scoped memory for tpu_custom_call.1']
    %8 = vsyncpa [#allocation3], 0
    // Predicated region
    $region2: #{tpu_custom_call.1} parent=1 // pred_check
      _
    $region3: #{tpu_custom_call.1} parent=1 // pred_check_branch
      %10 = sbr.rel (0) target = $region5
    $region4: #{tpu_custom_call.1} parent=1 // pred_region
      _
    $region5: #{tpu_custom_call.1} parent=1 // pred_fallthru
      _
    // Predicated region
    $region6: #{tpu_custom_call.1} parent=1 // pred_check
      _
    $region7: #{tpu_custom_call.1} parent=1 // pred_check_branch
      %12 = sbr.rel (0) target = $region9
    $region8: #{tpu_custom_call.1} parent=1 // pred_region
      _
    $region9: #{tpu_custom_call.1} parent=1 // pred_fallthru
      _
    // Predicated region
    $region10: #{tpu_custom_call.1} parent=1 // pred_check
      _
    $region11: #{tpu_custom_call.1} parent=1 // pred_check_branch
      %14 = sbr.rel (0) target = $region13
    $region12: #{tpu_custom_call.1} parent=1 // pred_region
      _
    $region13: #{tpu_custom_call.1} parent=1 // pred_fallthru
      _
    %v15 = vld [vmem:[%s0] sm:$0xff]
    %v16 = vmul.f32 %v15, %v15
    %vm17 = vcmask 261120
    %v18 = vsel %vm17, %v16, 0.0
    %19 = vadd.xlane.f32.xlu0 %v18
    %v20 = vpop.xlane.xlu0 %19
    %v21 = vmax.f32 %v20, 1e-16
    %v22 = vrsqrt.pop %v21
    %v23 = vmul.f32 %v15, %v22
    %v25 = vsel %vm17, %v23, 0
    %27 = vmatprep.subr.mxu0 0.0
    %28 = vmatpush1.xpose.msra.mxu0 %v25
    %29 = vmatprep.subr.mxu0 0.0
    %30 = vmatpush1.xpose.msra.mxu0 0.0
    %31 = vmatprep.subr.mxu0 0.0
    %32 = vmatpush1.xpose.msra.mxu0 0.0
    %33 = vmatprep.subr.mxu0 0.0
    %34 = vmatpush1.xpose.msra.mxu0 0.0
    %35 = vmatprep.subr.mxu0 0.0
    %36 = vmatpush1.xpose.msra.mxu0 0.0
    %37 = vmatprep.subr.mxu0 0.0
    %38 = vmatpush1.xpose.msra.mxu0 0.0
    %39 = vmatprep.subr.mxu0 0.0
    %40 = vmatpush1.xpose.msra.mxu0 0.0
    %41 = vmatprep.subr.mxu0 0.0
    %42 = vmatpush1.xpose.msra.mxu0 0.0
    %43 = vmatprep.subr.mxu0 0.0
    %44 = vmatpush1.xpose.msra.mxu0 0.0
    %45 = vmatprep.subr.mxu0 0.0
    %46 = vmatpush1.xpose.msra.mxu0 0.0
    %47 = vmatprep.subr.mxu0 0.0
    %48 = vmatpush1.xpose.msra.mxu0 0.0
    %49 = vmatprep.subr.mxu0 0.0
    %50 = vmatpush1.xpose.msra.mxu0 0.0
    %51 = vmatprep.subr.mxu0 0.0
    %52 = vmatpush1.xpose.msra.mxu0 0.0
    %53 = vmatprep.subr.mxu0 0.0
    %54 = vmatpush1.xpose.msra.mxu0 0.0
    %55 = vmatprep.subr.mxu0 0.0
    %56 = vmatpush1.xpose.msra.mxu0 0.0
    %57 = vmatprep.subr.mxu0 0.0
    %58 = vmatpush1.xpose.msra.mxu0 0.0
    %59 = vmatprep.subr.mxu0 0.0
    %60 = vmatpush1.xpose.msra.mxu0 0.0
    %61 = vmatprep.subr.mxu0 0.0
    %62 = vmatpush1.xpose.msra.mxu0 0.0
    %63 = vmatprep.subr.mxu0 0.0
    %64 = vmatpush1.xpose.msra.mxu0 0.0
    %65 = vmatprep.subr.mxu0 0.0
    %66 = vmatpush1.xpose.msra.mxu0 0.0
    %67 = vmatprep.subr.mxu0 0.0
    %68 = vmatpush1.xpose.msra.mxu0 0.0
    %69 = vmatprep.subr.mxu0 0.0
    %70 = vmatpush1.xpose.msra.mxu0 0.0
    %71 = vmatprep.subr.mxu0 0.0
    %72 = vmatpush1.xpose.msra.mxu0 0.0
    %73 = vmatprep.subr.mxu0 0.0
    %74 = vmatpush1.xpose.msra.mxu0 0.0
    %75 = vmatprep.subr.mxu0 0.0
    %76 = vmatpush1.xpose.msra.mxu0 0.0
    %77 = vmatprep.subr.mxu0 0.0
    %78 = vmatpush1.xpose.msra.mxu0 0.0
    %79 = vmatprep.subr.mxu0 0.0
    %80 = vmatpush1.xpose.msra.mxu0 0.0
    %81 = vmatprep.subr.mxu0 0.0
    %82 = vmatpush1.xpose.msra.mxu0 0.0
    %83 = vmatprep.subr.mxu0 0.0
    %84 = vmatpush1.xpose.msra.mxu0 0.0
    %85 = vmatprep.subr.mxu0 0.0
    %86 = vmatpush1.xpose.msra.mxu0 0.0
    %87 = vmatprep.subr.mxu0 0.0
    %88 = vmatpush1.xpose.msra.mxu0 0.0
    %89 = vmatprep.subr.mxu0 0.0
    %90 = vmatpush1.xpose.msra.mxu0 0.0
    %91 = vmatprep.mubr.f32.mxu0 0.0
    %92 = vmatmul.mubr.f32.gmra.mrb[0].mxu0 %v25
    %v93 = vpop.f32.mrb[0].mxu0
    %v94 = vadd.f32 0.0, %v93
    %v95 = vpop.f32.mrb[0].mxu0
    %96 = vdwg.mxu0
    %v97 = vlaneseq
    %v98 = vshrl.u32 %v97, 7
    %v99 = vlaneseq
    %v100 = vand.u32 %v99, 127
    %vm101 = vcmp.eq.s32.totalorder %v98, %v100
    %v102 = vsel %vm101, 1, 0
    %v103 = vcvt.s32.f32 %v102
    %v104 = vsub.f32 1.0, %v103
    %v105 = vld [vmem:[%s1] sm:$0xff]
    %106 = vset.pattern.permute.xlu0 0
    %107 = vperm.xlu0 %106, %v105
    %v108 = vpop.permute.xlu0 %107
    %v109 = vld [vmem:[%s2] sm:$0x1]
    %v110 = vlaneseq
    %v111 = vshrl.u32 %v110, 7
    %v112 = vsub.s32 0, %v111
    %v113 = vrot.slane %v109, %v112
    %vm114 = vcmp.eq.s32.totalorder %v108, %v113
    %v115 = vsel %vm114, 1, 0
    %v116 = vcvt.s32.f32 %v115
    %v117 = vmul.f32 %v94, 20.0
    %v118 = vmul.f32 %v117, 1.442695
    %v119 = vpow.pop %v118
    %v120 = vmul.f32 %v119, %v104
    %v121 = vmul.f32 %v116, %v120
    %v122 = vsub.f32 %v120, %v121
    %vm123 = vcmask 64512
    %v124 = vsel %vm123, %v122, 0.0
    %125 = vadd.xlane.f32.xlu0 %v124
    %v126 = vpop.xlane.xlu0 %125
    %v127 = vadd.f32 %v121, %v126
    %v128 = vrcp.pop %v127
    %v129 = vmul.f32 %v121, %v128
    %v130 = vsub.f32 1.0, %v116
    %v131 = vadd.f32 %v130, %v129
    %v132 = vadd.f32 %v131, %v103
    %v133 = vlog2.pop %v132
    %v134 = vmul.f32 %v133, 0.6931472
    %v135 = vsub.f32 0.0, %v134
    %v136 = vsel %vm123, %v135, 0.0
    %137 = vadd.xlane.f32.xlu0 %v136
    %v138 = vpop.xlane.xlu0 %137
    %v139 = vrot.slane %v138, 4
    %v140 = vadd.f32 %v138, %v139
    %v141 = vrot.slane %v140, 2
    %v142 = vadd.f32 %v140, %v141
    %v143 = vrot.slane %v142, 1
    %v144 = vadd.f32 %v142, %v143
    %v145 = vmul.f32 %v144, 0.0625
    %vm146 = vcmask 0
    %147 = vst.msk [vmem:[#allocation2] sm:$0x1] %vm146, %v145
    // Predicated region
    $region14: #{tpu_custom_call.1} parent=1 // pred_check
      _
    $region15: #{tpu_custom_call.1} parent=1 // pred_check_branch
      %149 = sbr.rel (0) target = $region17
    $region16: #{tpu_custom_call.1} parent=1 // pred_region
      %s151 = ssub.s32 16, 16
      %152 = vsyncadd [#allocation3], %s151
      %s154 = sshll.u32 [#allocation2], 4
      %s155 = int_to_ptr.vmem [resolvable:$true] %s154
      %157 = dma.vmem_to_hbm [thread:$0]  %s155, 16, %s3, [#allocation3]
    $region17: #{tpu_custom_call.1} parent=1 // pred_fallthru
      _
    // Predicated region
    $region18: #{tpu_custom_call.1} parent=1 // pred_check
      _
    $region19: #{tpu_custom_call.1} parent=1 // pred_check_branch
      %159 = sbr.rel (0) target = $region21
    $region20: #{tpu_custom_call.1} parent=1 // pred_region
      %160 = dma.done [#allocation3], 16
    $region21: #{tpu_custom_call.1} parent=1 // pred_fallthru
      _
    %161 = vsyncpa [#allocation3], 1

</llo_original>
